<compile_context>
chip_gen: v6e
topology: v6e:2x2x1
jax: 0.10.0
libtpu: 0.0.40
codegen_flags: <defaults>
</compile_context>

<pallas_src>
import jax
import jax.numpy as jnp
from jax.experimental import pallas as pl
from jax.experimental.pallas import tpu as pltpu

EPS = 1e-5
ALPHA = 0.2


def _round_up(x, m):
    return (x + m - 1) // m * m


# ----------------------------- Pass 1 kernel -------------------------------
def _conv_stats_kernel(p_ref, w_ref, y_ref, sum_ref, ssq_ref):
    """y_tile = patches_tile @ W (bf16 in, f32 acc); write y; accumulate
    per-channel sum and sum-of-squares across the M grid axis."""
    @pl.when(pl.program_id(0) == 0)
    def _():
        sum_ref[...] = jnp.zeros_like(sum_ref)
        ssq_ref[...] = jnp.zeros_like(ssq_ref)

    y = jnp.dot(p_ref[...], w_ref[...], preferred_element_type=jnp.float32)
    y_ref[...] = y
    sum_ref[...] += jnp.sum(y, axis=0, keepdims=True)
    ssq_ref[...] += jnp.sum(y * y, axis=0, keepdims=True)


# ----------------------------- Pass 2 kernel -------------------------------
def _bn_lrelu_kernel(y_ref, scale_ref, shift_ref, o_ref):
    """Folded BatchNorm (per-channel scale/shift) + LeakyReLU, f32."""
    z = y_ref[...] * scale_ref[...] + shift_ref[...]
    o_ref[...] = jnp.where(z >= 0.0, z, ALPHA * z)


# ------------------------------- im2col glue -------------------------------
def _im2col(x, kh, kw, stride, padding):
    """x: (N, C, H, W) -> patches: (N*H_out*W_out, C*kh*kw)."""
    n, c, h, w = x.shape
    h_out = (h + 2 * padding - kh) // stride + 1
    w_out = (w + 2 * padding - kw) // stride + 1
    xp = jnp.pad(x, ((0, 0), (0, 0), (padding, padding), (padding, padding)))
    rows = (jnp.arange(h_out) * stride)[:, None] + jnp.arange(kh)[None, :]  # (H_out, KH)
    cols = (jnp.arange(w_out) * stride)[:, None] + jnp.arange(kw)[None, :]  # (W_out, KW)
    # -> (N, C, H_out, W_out, KH, KW)
    patches = xp[:, :, rows[:, None, :, None], cols[None, :, None, :]]
    # -> (N, H_out, W_out, C, KH, KW) so that K axis = (C, KH, KW) channel-major
    patches = jnp.transpose(patches, (0, 2, 3, 1, 4, 5))
    return patches.reshape(n * h_out * w_out, c * kh * kw), (n, h_out, w_out)


# --------------------------------- wrapper ---------------------------------
def conv_bn_leaky_relu(x, conv_w, conv_b, gamma, beta, *, stride=2, padding=1,
                       tile_m=1024):
    """x: (N, C_in, H, W) NCHW; conv_w: (C_out, C_in, KH, KW). Returns NCHW."""
    del conv_b  # conv bias is exactly cancelled by training-mode BN mean sub.
    c_out, c_in, kh, kw = conv_w.shape
    patches, (n, h_out, w_out) = _im2col(x, kh, kw, stride, padding)
    m, k = patches.shape

    # Lane/MXU-friendly padding.
    k_pad = _round_up(k, 128)
    c_pad = _round_up(c_out, 128)

    # Cap TILE_M so double-buffered (bf16 patch tile + f32 y tile) stays under
    # a conservative 12 MiB (fits v5e's 16 MiB default scoped VMEM; v6e/v7x
    # have 32 MiB defaults).
    per_row_bytes = 2 * (k_pad * 2 + c_pad * 4)
    tile_cap = max(8, ((12 * 1024 * 1024) // per_row_bytes) // 8 * 8)
    tile_m = min(tile_m, tile_cap, _round_up(m, 8))
    m_pad = _round_up(m, tile_m)
    n_tiles = m_pad // tile_m

    # Padded bf16 operands (zero rows/cols -> exact zeros in y, stats stay exact).
    patches_p = jnp.pad(patches.astype(jnp.bfloat16),
                        ((0, m_pad - m), (0, k_pad - k)))
    w_t = conv_w.reshape(c_out, c_in * kh * kw).T.astype(jnp.bfloat16)  # (K, C_out)
    w_p = jnp.pad(w_t, ((0, k_pad - k), (0, c_pad - c_out)))

    # ---------------- Pass 1: conv matmul + per-channel stats ----------------
    p1_bytes = (m_pad * k_pad * 2 + k_pad * c_pad * 2
                + m_pad * c_pad * 4 + 2 * c_pad * 4)
    y_flat, ch_sum, ch_ssq = pl.pallas_call(
        _conv_stats_kernel,
        out_shape=(
            jax.ShapeDtypeStruct((m_pad, c_pad), jnp.float32),
            jax.ShapeDtypeStruct((1, c_pad), jnp.float32),
            jax.ShapeDtypeStruct((1, c_pad), jnp.float32),
        ),
        grid=(n_tiles,),
        in_specs=[
            pl.BlockSpec((tile_m, k_pad), lambda i: (i, 0)),
            pl.BlockSpec((k_pad, c_pad), lambda i: (0, 0)),
        ],
        out_specs=(
            pl.BlockSpec((tile_m, c_pad), lambda i: (i, 0)),
            pl.BlockSpec((1, c_pad), lambda i: (0, 0)),
            pl.BlockSpec((1, c_pad), lambda i: (0, 0)),
        ),
        compiler_params=pltpu.CompilerParams(
            dimension_semantics=("arbitrary",)),
        cost_estimate=pl.CostEstimate(
            flops=2 * m_pad * k_pad * c_pad,
            transcendentals=0,
            bytes_accessed=p1_bytes),
    )(patches_p, w_p)

    # --------- Fold BN into per-channel scale/shift (tiny, plain JAX) --------
    inv_m = jnp.float32(1.0 / m)            # padded rows contribute exactly 0
    mean = ch_sum * inv_m
    var = jnp.maximum(ch_ssq * inv_m - mean * mean, 0.0)   # biased variance
    gamma_p = jnp.pad(gamma.astype(jnp.float32).reshape(1, c_out),
                      ((0, 0), (0, c_pad - c_out)))
    beta_p = jnp.pad(beta.astype(jnp.float32).reshape(1, c_out),
                     ((0, 0), (0, c_pad - c_out)))
    scale = gamma_p * jax.lax.rsqrt(var + EPS)
    shift = beta_p - mean * scale

    # ---------------- Pass 2: normalize + LeakyReLU (parallel) ---------------
    p2_bytes = 2 * m_pad * c_pad * 4 + 2 * c_pad * 4
    out_flat = pl.pallas_call(
        _bn_lrelu_kernel,
        out_shape=jax.ShapeDtypeStruct((m_pad, c_pad), jnp.float32),
        grid=(n_tiles,),
        in_specs=[
            pl.BlockSpec((tile_m, c_pad), lambda i: (i, 0)),
            pl.BlockSpec((1, c_pad), lambda i: (0, 0)),
            pl.BlockSpec((1, c_pad), lambda i: (0, 0)),
        ],
        out_specs=pl.BlockSpec((tile_m, c_pad), lambda i: (i, 0)),
        compiler_params=pltpu.CompilerParams(
            dimension_semantics=("parallel",)),
        cost_estimate=pl.CostEstimate(
            flops=3 * m_pad * c_pad,
            transcendentals=0,
            bytes_accessed=p2_bytes),
    )(y_flat, scale, shift)

    # (M, C_out) NHWC-flat -> (N, H_out, W_out, C_out) -> NCHW (PyTorch parity).
    out = out_flat[:m, :c_out].reshape(n, h_out, w_out, c_out)
    return jnp.transpose(out, (0, 3, 1, 2))


# ------------------------------- reference ---------------------------------
def _reference(x, conv_w, conv_b, gamma, beta, *, stride=2, padding=1):
    y = jax.lax.conv_general_dilated(
        x, conv_w, window_strides=(stride, stride),
        padding=[(padding, padding), (padding, padding)],
        dimension_numbers=("NCHW", "OIHW", "NCHW"))
    y = y + conv_b.reshape(1, -1, 1, 1)
    mean = jnp.mean(y, axis=(0, 2, 3), keepdims=True)
    var = jnp.mean((y - mean) ** 2, axis=(0, 2, 3), keepdims=True)
    z = (y - mean) * jax.lax.rsqrt(var + EPS)
    z = z * gamma.reshape(1, -1, 1, 1) + beta.reshape(1, -1, 1, 1)
    return jnp.where(z >= 0, z, ALPHA * z)


if __name__ == "__main__":
    key = jax.random.PRNGKey(0)
    k_x, k_w, k_b = jax.random.split(key, 3)

    N, C_IN, H, W = 2, 4, 16, 16
    C_OUT, KH, KW = 8, 4, 4

    x = jax.random.normal(k_x, (N, C_IN, H, W), dtype=jnp.float32)
    fan_in = C_IN * KH * KW
    conv_w = jax.random.normal(k_w, (C_OUT, C_IN, KH, KW), dtype=jnp.float32) / jnp.sqrt(fan_in)
    conv_b = jax.random.normal(k_b, (C_OUT,), dtype=jnp.float32) * 0.1
    gamma = jnp.ones((C_OUT,), dtype=jnp.float32)   # nn.BatchNorm2d default
    beta = jnp.zeros((C_OUT,), dtype=jnp.float32)   # nn.BatchNorm2d default

    out = conv_bn_leaky_relu(x, conv_w, conv_b, gamma, beta, stride=2, padding=1)
    out = jax.block_until_ready(out)
    assert out.shape == (N, C_OUT, 8, 8), out.shape

    ref = jax.block_until_ready(_reference(x, conv_w, conv_b, gamma, beta))
    max_err = float(jnp.max(jnp.abs(out - ref)))
    assert max_err < 5e-2, f"max abs err {max_err}"  # bf16 matmul tolerance

    print("KERNEL_OK")
</pallas_src>

<mosaic_0001>
module attributes {stable_mosaic.version = 11 : i64} {
  func.func @_conv_stats_kernel(%arg0: i32, %arg1: memref<128x128xbf16, #tpu.memory_space<vmem>>, %arg2: memref<128x128xbf16, #tpu.memory_space<vmem>>, %arg3: memref<128x128xf32, #tpu.memory_space<vmem>>, %arg4: memref<1x128xf32, #tpu.memory_space<vmem>>, %arg5: memref<1x128xf32, #tpu.memory_space<vmem>>) attributes {dimension_semantics = [#tpu.dimension_semantics<arbitrary>], iteration_bounds = array<i64: 1>, scalar_prefetch = 0 : i64, scratch_operands = 0 : i64, tpu.core_type = #tpu.core_type<tc>, window_params = [{transform_indices = @transform_0, window_bounds = array<i64: 128, 128>}, {pipeline_mode = #tpu.pipeline_mode<synchronous>, transform_indices = @transform_1, window_bounds = array<i64: 128, 128>}, {transform_indices = @transform_2, window_bounds = array<i64: 128, 128>}, {pipeline_mode = #tpu.pipeline_mode<synchronous>, transform_indices = @transform_3, window_bounds = array<i64: 1, 128>}, {pipeline_mode = #tpu.pipeline_mode<synchronous>, transform_indices = @transform_4, window_bounds = array<i64: 1, 128>}]} {
    %c0_i32 = arith.constant 0 : i32
    %0 = arith.cmpi eq, %arg0, %c0_i32 : i32
    %1 = arith.extui %0 : i1 to i32
    %c0_i32_0 = arith.constant 0 : i32
    %2 = arith.cmpi ne, %1, %c0_i32_0 : i32
    scf.if %2 {
      %cst_16 = arith.constant 0.000000e+00 : f32
      %18 = vector.broadcast %cst_16 : f32 to vector<1x128xf32>
      %c0_17 = arith.constant 0 : index
      %c0_18 = arith.constant 0 : index
      %19 = vector.load %arg4[%c0_17, %c0_18] : memref<1x128xf32, #tpu.memory_space<vmem>>, vector<1x128xf32>
      tpu.vector_store %arg4[%c0_17, %c0_18], %18 {strides = array<i32>} : memref<1x128xf32, #tpu.memory_space<vmem>>, vector<1x128xf32>,
      %cst_19 = arith.constant 0.000000e+00 : f32
      %20 = vector.broadcast %cst_19 : f32 to vector<1x128xf32>
      %c0_20 = arith.constant 0 : index
      %c0_21 = arith.constant 0 : index
      %21 = vector.load %arg5[%c0_20, %c0_21] : memref<1x128xf32, #tpu.memory_space<vmem>>, vector<1x128xf32>
      tpu.vector_store %arg5[%c0_20, %c0_21], %20 {strides = array<i32>} : memref<1x128xf32, #tpu.memory_space<vmem>>, vector<1x128xf32>,
    } else {
    }
    %c0 = arith.constant 0 : index
    %c0_1 = arith.constant 0 : index
    %3 = vector.load %arg1[%c0, %c0_1] : memref<128x128xbf16, #tpu.memory_space<vmem>>, vector<128x128xbf16>
    %c0_2 = arith.constant 0 : index
    %c0_3 = arith.constant 0 : index
    %4 = vector.load %arg2[%c0_2, %c0_3] : memref<128x128xbf16, #tpu.memory_space<vmem>>, vector<128x128xbf16>
    %cst = arith.constant dense<0.000000e+00> : vector<128x128xf32>
    %5 = tpu.matmul %3, %4, %cst {dimension_numbers = #tpu.dot_dimension_numbers<[1], [0], [0], [1], [0, 0, 1, 1], [], []>} : vector<128x128xbf16>, vector<128x128xbf16>, vector<128x128xf32> -> vector<128x128xf32>
    %c0_4 = arith.constant 0 : index
    %c0_5 = arith.constant 0 : index
    %6 = vector.load %arg3[%c0_4, %c0_5] : memref<128x128xf32, #tpu.memory_space<vmem>>, vector<128x128xf32>
    tpu.vector_store %arg3[%c0_4, %c0_5], %5 {strides = array<i32>} : memref<128x128xf32, #tpu.memory_space<vmem>>, vector<128x128xf32>,
    %c0_6 = arith.constant 0 : index
    %c0_7 = arith.constant 0 : index
    %7 = vector.load %arg4[%c0_6, %c0_7] : memref<1x128xf32, #tpu.memory_space<vmem>>, vector<1x128xf32>
    %cst_8 = arith.constant dense<0.000000e+00> : vector<128xf32>
    %8 = vector.multi_reduction <add>, %5, %cst_8 [0] : vector<128x128xf32> to vector<128xf32>
    %9 = vector.shape_cast %8 : vector<128xf32> to vector<1x128xf32>
    %10 = arith.addf %7, %9 : vector<1x128xf32>
    %c0_9 = arith.constant 0 : index
    %c0_10 = arith.constant 0 : index
    %11 = vector.load %arg4[%c0_9, %c0_10] : memref<1x128xf32, #tpu.memory_space<vmem>>, vector<1x128xf32>
    tpu.vector_store %arg4[%c0_9, %c0_10], %10 {strides = array<i32>} : memref<1x128xf32, #tpu.memory_space<vmem>>, vector<1x128xf32>,
    %c0_11 = arith.constant 0 : index
    %c0_12 = arith.constant 0 : index
    %12 = vector.load %arg5[%c0_11, %c0_12] : memref<1x128xf32, #tpu.memory_space<vmem>>, vector<1x128xf32>
    %13 = arith.mulf %5, %5 : vector<128x128xf32>
    %cst_13 = arith.constant dense<0.000000e+00> : vector<128xf32>
    %14 = vector.multi_reduction <add>, %13, %cst_13 [0] : vector<128x128xf32> to vector<128xf32>
    %15 = vector.shape_cast %14 : vector<128xf32> to vector<1x128xf32>
    %16 = arith.addf %12, %15 : vector<1x128xf32>
    %c0_14 = arith.constant 0 : index
    %c0_15 = arith.constant 0 : index
    %17 = vector.load %arg5[%c0_14, %c0_15] : memref<1x128xf32, #tpu.memory_space<vmem>>, vector<1x128xf32>
    tpu.vector_store %arg5[%c0_14, %c0_15], %16 {strides = array<i32>} : memref<1x128xf32, #tpu.memory_space<vmem>>, vector<1x128xf32>,
    return
  }
  func.func @transform_0(%arg0: i32) -> (i32, i32) {
    %c0_i32 = arith.constant 0 : i32
    %c0_i32_0 = arith.constant 0 : i32
    return %arg0, %c0_i32 : i32, i32
  }
  func.func @transform_1(%arg0: i32) -> (i32, i32) {
    %c0_i32 = arith.constant 0 : i32
    %c0_i32_0 = arith.constant 0 : i32
    %c0_i32_1 = arith.constant 0 : i32
    return %c0_i32, %c0_i32_0 : i32, i32
  }
  func.func @transform_2(%arg0: i32) -> (i32, i32) {
    %c0_i32 = arith.constant 0 : i32
    %c0_i32_0 = arith.constant 0 : i32
    return %arg0, %c0_i32 : i32, i32
  }
  func.func @transform_3(%arg0: i32) -> (i32, i32) {
    %c0_i32 = arith.constant 0 : i32
    %c0_i32_0 = arith.constant 0 : i32
    %c0_i32_1 = arith.constant 0 : i32
    return %c0_i32, %c0_i32_0 : i32, i32
  }
  func.func @transform_4(%arg0: i32) -> (i32, i32) {
    %c0_i32 = arith.constant 0 : i32
    %c0_i32_0 = arith.constant 0 : i32
    %c0_i32_1 = arith.constant 0 : i32
    return %c0_i32, %c0_i32_0 : i32, i32
  }
}

</mosaic_0001>

<llo_original>
// kernel: tpu_custom_call.1
$region0: #{tpu_custom_call.1}
  #allocation0 [shape = 'u32[]', space=smem, size = 0x4, offset = 0x4, fixed_abs, tag = 'smem constant byte address 0x4 - core index']
  #allocation1 [shape = 'u32[144,128]{1,0:T(1,128)}', space=vmem, size = 0x12000, scoped, tag = 'internal scratch']
  %s0 = inlined_call_operand.hbm [shape: bf16[128,128], index: 0, kind: input, shape index: {}]
  %s1 = inlined_call_operand.hbm [shape: bf16[128,128], index: 1, kind: input, shape index: {}]
  %s2 = inlined_call_operand.hbm [shape: f32[128,128], index: 2, kind: output, shape index: {0}]
  %s3 = inlined_call_operand.hbm [shape: f32[1,128], index: 3, kind: output, shape index: {1}]
  %s4 = inlined_call_operand.hbm [shape: f32[1,128], index: 4, kind: output, shape index: {2}]
  %5 = xla_tuple %s2, %s3, %s4
  %s6 = sld [smem:[#allocation0]]
  $region46: #{tpu_custom_call.1} parent=0
    _
  %s8 = ssub.s32 1, %s6
  %s9 = scalar_select 0, %s8, %s6
  $region1: #{tpu_custom_call.1} parent=0
    #allocation2 [shape = 'u8[32768]{0}', space=vmem, size = 0x8000, scoped, tag = 'input window, operand 0, single buffered']
    #allocation3 [shape = 's32[1]{0}', space=sflag, size = 0x4, scoped, tag = 'scoped memory for tpu_custom_call.1']
    #allocation4 [shape = 's32[1]{0}', space=sflag, size = 0x4, scoped, tag = 'scoped memory for tpu_custom_call.1']
    #allocation5 [shape = 'u8[32768]{0}', space=vmem, size = 0x8000, scoped, tag = 'input window, operand 1, single buffered']
    #allocation6 [shape = 's32[1]{0}', space=sflag, size = 0x4, scoped, tag = 'scoped memory for tpu_custom_call.1']
    #allocation7 [shape = 'u8[65536]{0}', space=vmem, size = 0x10000, scoped, tag = 'output window, operand 0, single buffered']
    #allocation8 [shape = 'u8[512]{0}', space=vmem, size = 0x400, scoped, tag = 'output window, operand 1, single buffered']
    #allocation9 [shape = 's32[1]{0}', space=sflag, size = 0x4, scoped, tag = 'scoped memory for tpu_custom_call.1']
    #allocation10 [shape = 'u8[512]{0}', space=vmem, size = 0x400, scoped, tag = 'output window, operand 2, single buffered']
    %10 = vsyncpa [#allocation3], 0
    %11 = vsyncpa [#allocation6], 0
    %12 = vsyncpa [#allocation4], 0
    %13 = vsyncpa [#allocation9], 0
    // Predicated region
    $region2: #{tpu_custom_call.1} parent=1 // pred_check
      _
    $region3: #{tpu_custom_call.1} parent=1 // pred_check_branch
      %15 = sbr.rel (0) target = $region5
    $region4: #{tpu_custom_call.1} parent=1 // pred_region
      %s17 = ssub.s32 1024, 1024
      %18 = vsyncadd [#allocation3], %s17
      %s19 = sshll.u32 [#allocation2], 4
      %s20 = int_to_ptr.vmem [resolvable:$true] %s19
      %25 = dma.hbm_to_vmem [thread:$0]  %s0, 1024, %s20, [#allocation3], 64, 64, 4
    $region5: #{tpu_custom_call.1} parent=1 // pred_fallthru
      _
    // Predicated region
    $region6: #{tpu_custom_call.1} parent=1 // pred_check
      _
    $region7: #{tpu_custom_call.1} parent=1 // pred_check_branch
      %27 = sbr.rel (0) target = $region9
    $region8: #{tpu_custom_call.1} parent=1 // pred_region
      %s29 = ssub.s32 1024, 1024
      %30 = vsyncadd [#allocation6], %s29
      %s31 = sshll.u32 [#allocation5], 4
      %s32 = int_to_ptr.vmem [resolvable:$true] %s31
      %37 = dma.hbm_to_vmem [thread:$0]  %s1, 1024, %s32, [#allocation6], 64, 64, 4
    $region9: #{tpu_custom_call.1} parent=1 // pred_fallthru
      _
    // Predicated region
    $region10: #{tpu_custom_call.1} parent=1 // pred_check
      _
    $region11: #{tpu_custom_call.1} parent=1 // pred_check_branch
      %39 = sbr.rel (0) target = $region13
    $region12: #{tpu_custom_call.1} parent=1 // pred_region
      %40 = dma.done [#allocation3], 1024
    $region13: #{tpu_custom_call.1} parent=1 // pred_fallthru
      _
    // Predicated region
    $region14: #{tpu_custom_call.1} parent=1 // pred_check
      _
    $region15: #{tpu_custom_call.1} parent=1 // pred_check_branch
      %42 = sbr.rel (0) target = $region17
    $region16: #{tpu_custom_call.1} parent=1 // pred_region
      %43 = dma.done [#allocation6], 1024
    $region17: #{tpu_custom_call.1} parent=1 // pred_fallthru
      _
    %p45 = scmp.eq.s32.totalorder 0, 0
    // Predicated region
    $region18: #{tpu_custom_call.1} parent=1 // pred_check
      %p46 = pneg %p45
    $region19: #{tpu_custom_call.1} parent=1 // pred_check_branch
      %48 = sbr.rel (%p46) target = $region21
    $region20: #{tpu_custom_call.1} parent=1 // pred_region
      %49 = vst [vmem:[#allocation8] sm:$0x1] 0.0
      %50 = vst [vmem:[#allocation10] sm:$0x1] 0.0
    $region21: #{tpu_custom_call.1} parent=1 // pred_fallthru
      _
    %v51 = vld [vmem:[#allocation2] sm:$0xf]
    %v52 = vld [vmem:[#allocation2 + $0x4] sm:$0xf]
    %v53 = vld [vmem:[#allocation2 + $0x8] sm:$0xf]
    %v54 = vld [vmem:[#allocation2 + $0xc] sm:$0xf]
    %v55 = vld [vmem:[#allocation2 + $0x10] sm:$0xf]
    %v56 = vld [vmem:[#allocation2 + $0x14] sm:$0xf]
    %v57 = vld [vmem:[#allocation2 + $0x18] sm:$0xf]
    %v58 = vld [vmem:[#allocation2 + $0x1c] sm:$0xf]
    %v59 = vld [vmem:[#allocation2 + $0x20] sm:$0xf]
    %v60 = vld [vmem:[#allocation2 + $0x24] sm:$0xf]
    %v61 = vld [vmem:[#allocation2 + $0x28] sm:$0xf]
    %v62 = vld [vmem:[#allocation2 + $0x2c] sm:$0xf]
    %v63 = vld [vmem:[#allocation2 + $0x30] sm:$0xf]
    %v64 = vld [vmem:[#allocation2 + $0x34] sm:$0xf]
    %v65 = vld [vmem:[#allocation2 + $0x38] sm:$0xf]
    %v66 = vld [vmem:[#allocation2 + $0x3c] sm:$0xf]
    %v67 = vld [vmem:[#allocation5] sm:$0xf]
    %v68 = vld [vmem:[#allocation5 + $0x4] sm:$0xf]
    %v69 = vld [vmem:[#allocation5 + $0x8] sm:$0xf]
    %v70 = vld [vmem:[#allocation5 + $0xc] sm:$0xf]
    %v71 = vld [vmem:[#allocation5 + $0x10] sm:$0xf]
    %v72 = vld [vmem:[#allocation5 + $0x14] sm:$0xf]
    %v73 = vld [vmem:[#allocation5 + $0x18] sm:$0xf]
    %v74 = vld [vmem:[#allocation5 + $0x1c] sm:$0xf]
    %v75 = vld [vmem:[#allocation5 + $0x20] sm:$0xf]
    %v76 = vld [vmem:[#allocation5 + $0x24] sm:$0xf]
    %v77 = vld [vmem:[#allocation5 + $0x28] sm:$0xf]
    %v78 = vld [vmem:[#allocation5 + $0x2c] sm:$0xf]
    %v79 = vld [vmem:[#allocation5 + $0x30] sm:$0xf]
    %v80 = vld [vmem:[#allocation5 + $0x34] sm:$0xf]
    %v81 = vld [vmem:[#allocation5 + $0x38] sm:$0xf]
    %v82 = vld [vmem:[#allocation5 + $0x3c] sm:$0xf]
    %v99 = vunpack.c.l.b16 %v51
    %v100 = vunpack.c.l.b16 %v52
    %v101 = vunpack.c.l.b16 %v53
    %v102 = vunpack.c.l.b16 %v54
    %v103 = vunpack.c.l.b16 %v55
    %v104 = vunpack.c.l.b16 %v56
    %v105 = vunpack.c.l.b16 %v57
    %v106 = vunpack.c.l.b16 %v58
    %v107 = vunpack.c.l.b16 %v59
    %v108 = vunpack.c.l.b16 %v60
    %v109 = vunpack.c.l.b16 %v61
    %v110 = vunpack.c.l.b16 %v62
    %v111 = vunpack.c.l.b16 %v63
    %v112 = vunpack.c.l.b16 %v64
    %v113 = vunpack.c.l.b16 %v65
    %v114 = vunpack.c.l.b16 %v66
    %v115 = vpack.c.b16 %v100, %v99
    %v116 = vpack.c.b16 %v102, %v101
    %v117 = vpack.c.b16 %v104, %v103
    %v118 = vpack.c.b16 %v106, %v105
    %v119 = vpack.c.b16 %v108, %v107
    %v120 = vpack.c.b16 %v110, %v109
    %v121 = vpack.c.b16 %v112, %v111
    %v122 = vpack.c.b16 %v114, %v113
    %v147 = vunpack.c.l.b16 %v67
    %v148 = vunpack.c.l.b16 %v68
    %v149 = vunpack.c.l.b16 %v69
    %v150 = vunpack.c.l.b16 %v70
    %v151 = vunpack.c.l.b16 %v71
    %v152 = vunpack.c.l.b16 %v72
    %v153 = vunpack.c.l.b16 %v73
    %v154 = vunpack.c.l.b16 %v74
    %v155 = vunpack.c.l.b16 %v75
    %v156 = vunpack.c.l.b16 %v76
    %v157 = vunpack.c.l.b16 %v77
    %v158 = vunpack.c.l.b16 %v78
    %v159 = vunpack.c.l.b16 %v79
    %v160 = vunpack.c.l.b16 %v80
    %v161 = vunpack.c.l.b16 %v81
    %v162 = vunpack.c.l.b16 %v82
    %v163 = vpack.c.b16 %v148, %v147
    %v164 = vpack.c.b16 %v150, %v149
    %v165 = vpack.c.b16 %v152, %v151
    %v166 = vpack.c.b16 %v154, %v153
    %v167 = vpack.c.b16 %v156, %v155
    %v168 = vpack.c.b16 %v158, %v157
    %v169 = vpack.c.b16 %v160, %v159
    %v170 = vpack.c.b16 %v162, %v161
    %179 = vmatprep.subr.bf16.mxu0 0
    %180 = vmatpush1.bf16.msra.mxu0 %v170
    %181 = vmatprep.subr.bf16.mxu0 0
    %182 = vmatpush1.bf16.msra.mxu0 %v169
    %183 = vmatprep.subr.bf16.mxu0 0
    %184 = vmatpush1.bf16.msra.mxu0 %v168
    %185 = vmatprep.subr.bf16.mxu0 0
    %186 = vmatpush1.bf16.msra.mxu0 %v167
    %187 = vmatprep.subr.bf16.mxu0 0
    %188 = vmatpush1.bf16.msra.mxu0 %v166
    %189 = vmatprep.subr.bf16.mxu0 0
    %190 = vmatpush1.bf16.msra.mxu0 %v165
    %191 = vmatprep.subr.bf16.mxu0 0
    %192 = vmatpush1.bf16.msra.mxu0 %v164
    %193 = vmatprep.subr.bf16.mxu0 0
    %194 = vmatpush1.bf16.msra.mxu0 %v163
    %195 = vmatprep.subr.bf16.mxu0 0
    %196 = vmatpush2.bf16.msra.mxu0 0
    %197 = vmatprep.subr.bf16.mxu0 0
    %198 = vmatpush2.bf16.msra.mxu0 0
    %199 = vmatprep.subr.bf16.mxu0 0
    %200 = vmatpush2.bf16.msra.mxu0 0
    %201 = vmatprep.subr.bf16.mxu0 0
    %202 = vmatpush2.bf16.msra.mxu0 0
    %203 = vmatprep.subr.bf16.mxu0 0
    %204 = vmatpush2.bf16.msra.mxu0 0
    %205 = vmatprep.subr.bf16.mxu0 0
    %206 = vmatpush2.bf16.msra.mxu0 0
    %207 = vmatprep.subr.bf16.mxu0 0
    %208 = vmatpush2.bf16.msra.mxu0 0
    %209 = vmatprep.subr.bf16.mxu0 0
    %210 = vmatpush2.bf16.msra.mxu0 0
    %211 = vmatprep.mubr.bf16.mxu0 0
    %212 = vmatmul.mubr.bf16.gmra.mxu0 %v115
    %v213 = vpop.f32.mrf.mxu0
    %v214 = vadd.f32 0.0, %v213
    %v215 = vpop.f32.mrf.mxu0
    %v216 = vpop.f32.mrf.mxu0
    %v217 = vadd.f32 0.0, %v216
    %v218 = vpop.f32.mrf.mxu0
    %219 = vmatprep.mubr.bf16.mxu0 0
    %220 = vmatmul.mubr.bf16.gmra.mxu0 %v116
    %v221 = vpop.f32.mrf.mxu0
    %v222 = vadd.f32 0.0, %v221
    %v223 = vpop.f32.mrf.mxu0
    %v224 = vpop.f32.mrf.mxu0
    %v225 = vadd.f32 0.0, %v224
    %v226 = vpop.f32.mrf.mxu0
    %227 = vmatprep.mubr.bf16.mxu0 0
    %228 = vmatmul.mubr.bf16.gmra.mxu0 %v117
    %v229 = vpop.f32.mrf.mxu0
    %v230 = vadd.f32 0.0, %v229
    %v231 = vpop.f32.mrf.mxu0
    %v232 = vpop.f32.mrf.mxu0
    %v233 = vadd.f32 0.0, %v232
    %v234 = vpop.f32.mrf.mxu0
    %235 = vmatprep.mubr.bf16.mxu0 0
    %236 = vmatmul.mubr.bf16.gmra.mxu0 %v118
    %v237 = vpop.f32.mrf.mxu0
    %v238 = vadd.f32 0.0, %v237
    %v239 = vpop.f32.mrf.mxu0
    %v240 = vpop.f32.mrf.mxu0
    %v241 = vadd.f32 0.0, %v240
    %v242 = vpop.f32.mrf.mxu0
    %243 = vmatprep.mubr.bf16.mxu0 0
    %244 = vmatmul.mubr.bf16.gmra.mxu0 %v119
    %v245 = vpop.f32.mrf.mxu0
    %v246 = vadd.f32 0.0, %v245
    %v247 = vpop.f32.mrf.mxu0
    %v248 = vpop.f32.mrf.mxu0
    %v249 = vadd.f32 0.0, %v248
    %v250 = vpop.f32.mrf.mxu0
    %251 = vmatprep.mubr.bf16.mxu0 0
    %252 = vmatmul.mubr.bf16.gmra.mxu0 %v120
    %v253 = vpop.f32.mrf.mxu0
    %v254 = vadd.f32 0.0, %v253
    %v255 = vpop.f32.mrf.mxu0
    %v256 = vpop.f32.mrf.mxu0
    %v257 = vadd.f32 0.0, %v256
    %v258 = vpop.f32.mrf.mxu0
    %259 = vmatprep.mubr.bf16.mxu0 0
    %260 = vmatmul.mubr.bf16.gmra.mxu0 %v121
    %v261 = vpop.f32.mrf.mxu0
    %v262 = vadd.f32 0.0, %v261
    %v263 = vpop.f32.mrf.mxu0
    %v264 = vpop.f32.mrf.mxu0
    %v265 = vadd.f32 0.0, %v264
    %v266 = vpop.f32.mrf.mxu0
    %267 = vmatprep.mubr.bf16.mxu0 0
    %268 = vmatmul.mubr.bf16.gmra.mxu0 %v122
    %v269 = vpop.f32.mrf.mxu0
    %v270 = vadd.f32 0.0, %v269
    %v271 = vpop.f32.mrf.mxu0
    %v272 = vpop.f32.mrf.mxu0
    %v273 = vadd.f32 0.0, %v272
    %v274 = vpop.f32.mrf.mxu0
    %275 = vdwg.mxu0
    %276 = vst [vmem:[#allocation7] sm:$0xff] %v214
    %277 = vst [vmem:[#allocation7 + $0x8] sm:$0xff] %v217
    %278 = vst [vmem:[#allocation7 + $0x10] sm:$0xff] %v222
    %279 = vst [vmem:[#allocation7 + $0x18] sm:$0xff] %v225
    %280 = vst [vmem:[#allocation7 + $0x20] sm:$0xff] %v230
    %281 = vst [vmem:[#allocation7 + $0x28] sm:$0xff] %v233
    %282 = vst [vmem:[#allocation7 + $0x30] sm:$0xff] %v238
    %283 = vst [vmem:[#allocation7 + $0x38] sm:$0xff] %v241
    %284 = vst [vmem:[#allocation7 + $0x40] sm:$0xff] %v246
    %285 = vst [vmem:[#allocation7 + $0x48] sm:$0xff] %v249
    %286 = vst [vmem:[#allocation7 + $0x50] sm:$0xff] %v254
    %287 = vst [vmem:[#allocation7 + $0x58] sm:$0xff] %v257
    %288 = vst [vmem:[#allocation7 + $0x60] sm:$0xff] %v262
    %289 = vst [vmem:[#allocation7 + $0x68] sm:$0xff] %v265
    %290 = vst [vmem:[#allocation7 + $0x70] sm:$0xff] %v270
    %291 = vst [vmem:[#allocation7 + $0x78] sm:$0xff] %v273
    %v292 = vld [vmem:[#allocation8] sm:$0x1]
    %v293 = vadd.f32 %v214, %v217
    %v294 = vadd.f32 %v293, %v222
    %v295 = vadd.f32 %v294, %v225
    %v296 = vadd.f32 %v295, %v230
    %v297 = vadd.f32 %v296, %v233
    %v298 = vadd.f32 %v297, %v238
    %v299 = vadd.f32 %v298, %v241
    %v300 = vadd.f32 %v299, %v246
    %v301 = vadd.f32 %v300, %v249
    %v302 = vadd.f32 %v301, %v254
    %v303 = vadd.f32 %v302, %v257
    %v304 = vadd.f32 %v303, %v262
    %v305 = vadd.f32 %v304, %v265
    %v306 = vadd.f32 %v305, %v270
    %v307 = vadd.f32 %v306, %v273
    %v308 = vrot.slane %v307, 4
    %v309 = vadd.f32 %v307, %v308
    %v310 = vrot.slane %v309, 2
    %v311 = vadd.f32 %v309, %v310
    %v312 = vrot.slane %v311, 1
    %v313 = vadd.f32 %v311, %v312
    %v314 = vadd.f32 %v292, %v313
    %315 = vst [vmem:[#allocation8] sm:$0x1] %v314
    %v316 = vld [vmem:[#allocation10] sm:$0x1]
    %v317 = vmul.f32 %v214, %v214
    %v318 = vmul.f32 %v217, %v217
    %v319 = vmul.f32 %v222, %v222
    %v320 = vmul.f32 %v225, %v225
    %v321 = vmul.f32 %v230, %v230
    %v322 = vmul.f32 %v233, %v233
    %v323 = vmul.f32 %v238, %v238
    %v324 = vmul.f32 %v241, %v241
    %v325 = vmul.f32 %v246, %v246
    %v326 = vmul.f32 %v249, %v249
    %v327 = vmul.f32 %v254, %v254
    %v328 = vmul.f32 %v257, %v257
    %v329 = vmul.f32 %v262, %v262
    %v330 = vmul.f32 %v265, %v265
    %v331 = vmul.f32 %v270, %v270
    %v332 = vmul.f32 %v273, %v273
    %v333 = vadd.f32 %v317, %v318
    %v334 = vadd.f32 %v333, %v319
    %v335 = vadd.f32 %v334, %v320
    %v336 = vadd.f32 %v335, %v321
    %v337 = vadd.f32 %v336, %v322
    %v338 = vadd.f32 %v337, %v323
    %v339 = vadd.f32 %v338, %v324
    %v340 = vadd.f32 %v339, %v325
    %v341 = vadd.f32 %v340, %v326
    %v342 = vadd.f32 %v341, %v327
    %v343 = vadd.f32 %v342, %v328
    %v344 = vadd.f32 %v343, %v329
    %v345 = vadd.f32 %v344, %v330
    %v346 = vadd.f32 %v345, %v331
    %v347 = vadd.f32 %v346, %v332
    %v348 = vrot.slane %v347, 4
    %v349 = vadd.f32 %v347, %v348
    %v350 = vrot.slane %v349, 2
    %v351 = vadd.f32 %v349, %v350
    %v352 = vrot.slane %v351, 1
    %v353 = vadd.f32 %v351, %v352
    %v354 = vadd.f32 %v316, %v353
    %355 = vst [vmem:[#allocation10] sm:$0x1] %v354
    // Predicated region
    $region22: #{tpu_custom_call.1} parent=1 // pred_check
      _
    $region23: #{tpu_custom_call.1} parent=1 // pred_check_branch
      %357 = sbr.rel (0) target = $region25
    $region24: #{tpu_custom_call.1} parent=1 // pred_region
      %s359 = ssub.s32 2048, 2048
      %360 = vsyncadd [#allocation4], %s359
      %s361 = sshll.u32 [#allocation7], 4
      %s362 = int_to_ptr.vmem [resolvable:$true] %s361
      %367 = dma.vmem_to_hbm [thread:$0]  %s362, 2048, %s2, [#allocation4], 128, 128, 8
    $region25: #{tpu_custom_call.1} parent=1 // pred_fallthru
      _
    // Predicated region
    $region26: #{tpu_custom_call.1} parent=1 // pred_check
      _
    $region27: #{tpu_custom_call.1} parent=1 // pred_check_branch
      %369 = sbr.rel (0) target = $region29
    $region28: #{tpu_custom_call.1} parent=1 // pred_region
      %s371 = ssub.s32 16, 16
      %372 = vsyncadd [#allocation9], %s371
      %s374 = sshll.u32 [#allocation8], 4
      %s375 = int_to_ptr.vmem [resolvable:$true] %s374
      %377 = dma.vmem_to_hbm [thread:$0]  %s375, 16, %s3, [#allocation9]
    $region29: #{tpu_custom_call.1} parent=1 // pred_fallthru
      _
    // Predicated region
    $region30: #{tpu_custom_call.1} parent=1 // pred_check
      _
    $region31: #{tpu_custom_call.1} parent=1 // pred_check_branch
      %379 = sbr.rel (0) target = $region33
    $region32: #{tpu_custom_call.1} parent=1 // pred_region
      %s381 = ssub.s32 16, 16
      %382 = vsyncadd [#allocation9], %s381
      %s384 = sshll.u32 [#allocation10], 4
      %s385 = int_to_ptr.vmem [resolvable:$true] %s384
      %387 = dma.vmem_to_hbm [thread:$0]  %s385, 16, %s4, [#allocation9]
    $region33: #{tpu_custom_call.1} parent=1 // pred_fallthru
      _
    // Predicated region
    $region34: #{tpu_custom_call.1} parent=1 // pred_check
      _
    $region35: #{tpu_custom_call.1} parent=1 // pred_check_branch
      %389 = sbr.rel (0) target = $region37
    $region36: #{tpu_custom_call.1} parent=1 // pred_region
      %390 = dma.done [#allocation4], 2048
    $region37: #{tpu_custom_call.1} parent=1 // pred_fallthru
      _
    // Predicated region
    $region38: #{tpu_custom_call.1} parent=1 // pred_check
      _
    $region39: #{tpu_custom_call.1} parent=1 // pred_check_branch
      %392 = sbr.rel (0) target = $region41
    $region40: #{tpu_custom_call.1} parent=1 // pred_region
      %393 = dma.done [#allocation9], 16
    $region41: #{tpu_custom_call.1} parent=1 // pred_fallthru
      _
    // Predicated region
    $region42: #{tpu_custom_call.1} parent=1 // pred_check
      _
    $region43: #{tpu_custom_call.1} parent=1 // pred_check_branch
      %395 = sbr.rel (0) target = $region45
    $region44: #{tpu_custom_call.1} parent=1 // pred_region
      %396 = dma.done [#allocation9], 16
    $region45: #{tpu_custom_call.1} parent=1 // pred_fallthru
      _
    %397 = vsyncpa [#allocation3], 1
    %398 = vsyncpa [#allocation6], 1
    %399 = vsyncpa [#allocation4], 1
    %400 = vsyncpa [#allocation9], 1

</llo_original>
